<compile_context>
chip_gen: v5e
topology: v5e:2x2
jax: 0.10.0
libtpu: 0.0.40
codegen_flags: <defaults>
</compile_context>

<pallas_src>
import jax
import jax.numpy as jnp
from jax.experimental import pallas as pl
from jax.experimental.pallas import tpu as pltpu

HIDDEN = 128
NEG_SLOPE = 0.01           # PyTorch nn.LeakyReLU() default
TILE_B_MAX = 1024          # batch tile; fits VMEM budget across v5e/v6e/v7x
LANE = 128
SUBLANE = 8


def _round_up(n, m):
    return ((n + m - 1) // m) * m


def critic_kernel(x_ref, w1_ref, b1_ref, w2_ref, b2_ref, o_ref):
    # x:  (TILE_B, F_pad) bf16      w1: (F_pad, 128) bf16
    # b1: (1, 128) f32              w2: (1, 128) f32
    # b2: (1, 1) f32 (SMEM)         o : (TILE_B, 1) f32
    # Linear 1 on the MXU (bf16 inputs, f32 accumulate).
    h = jnp.dot(x_ref[...], w1_ref[...], preferred_element_type=jnp.float32)
    h = h + b1_ref[...]
    # LeakyReLU: slope > 0 => max(h, a*h). 2 VALU ops instead of cmp+mul+select.
    h = jnp.maximum(h, NEG_SLOPE * h)
    # Linear 2 (128 -> 1): VPU multiply + cross-lane sum (XLU), MXU stays free.
    out = jnp.sum(h * w2_ref[...], axis=-1, keepdims=True) + b2_ref[0, 0]
    o_ref[...] = out.astype(o_ref.dtype)


def critic_forward(x, w1, b1, w2, b2, *, tile_b_max=TILE_B_MAX):
    """Forward pass of Critic.

    x : (B, F)       float32
    w1: (HIDDEN, F)  float32   (PyTorch nn.Linear weight layout)
    b1: (HIDDEN,)    float32
    w2: (1, HIDDEN)  float32
    b2: (1,)         float32
    returns (B, 1) float32
    """
    B, F = x.shape

    # Pad contraction dim to a lane multiple; pick a VMEM-budgeted batch tile.
    F_pad = _round_up(max(F, LANE), LANE)
    tile_b = min(tile_b_max, _round_up(B, SUBLANE))
    B_pad = _round_up(B, tile_b)

    # Host-side layout prep: zero-pad, pre-transpose w1, and store the two big
    # streams (x, w1) as bf16 so both HBM traffic and MXU passes are halved.
    x_p = jnp.pad(x, ((0, B_pad - B), (0, F_pad - F))).astype(jnp.bfloat16)
    w1_t = jnp.pad(w1.T, ((0, F_pad - F), (0, 0))).astype(jnp.bfloat16)  # (F_pad, 128)
    b1_2d = b1.reshape(1, HIDDEN).astype(jnp.float32)
    w2_row = w2.reshape(1, HIDDEN).astype(jnp.float32)
    b2_2d = b2.reshape(1, 1).astype(jnp.float32)

    grid = (B_pad // tile_b,)
    out = pl.pallas_call(
        critic_kernel,
        out_shape=jax.ShapeDtypeStruct((B_pad, 1), jnp.float32),
        grid=grid,
        in_specs=[
            pl.BlockSpec((tile_b, F_pad), lambda i: (i, 0)),    # streamed x tiles
            pl.BlockSpec((F_pad, HIDDEN), lambda i: (0, 0)),    # resident weights
            pl.BlockSpec((1, HIDDEN), lambda i: (0, 0)),        # resident b1
            pl.BlockSpec((1, HIDDEN), lambda i: (0, 0)),        # resident w2 row
            pl.BlockSpec(memory_space=pltpu.MemorySpace.SMEM),  # b2 scalar
        ],
        out_specs=pl.BlockSpec((tile_b, 1), lambda i: (i, 0)),
        compiler_params=pltpu.CompilerParams(
            dimension_semantics=("parallel",),  # v7x: shard batch over both TCs
        ),
    )(x_p, w1_t, b1_2d, w2_row, b2_2d)
    return out[:B]


def init_params(key, in_feature):
    """Deterministic init mimicking PyTorch Linear default (U[-1/sqrt(fan_in), +])."""
    k1, k2, k3, k4 = jax.random.split(key, 4)
    bound1 = 1.0 / jnp.sqrt(jnp.float32(in_feature))
    bound2 = 1.0 / jnp.sqrt(jnp.float32(HIDDEN))
    w1 = jax.random.uniform(k1, (HIDDEN, in_feature), jnp.float32, -bound1, bound1)
    b1 = jax.random.uniform(k2, (HIDDEN,), jnp.float32, -bound1, bound1)
    w2 = jax.random.uniform(k3, (1, HIDDEN), jnp.float32, -bound2, bound2)
    b2 = jax.random.uniform(k4, (1,), jnp.float32, -bound2, bound2)
    return w1, b1, w2, b2


def reference_forward(x, w1, b1, w2, b2):
    h = x @ w1.T + b1
    h = jnp.where(h >= 0, h, NEG_SLOPE * h)
    return h @ w2.T + b2


if __name__ == "__main__":
    key = jax.random.PRNGKey(0)
    k_x, k_x2, k_p = jax.random.split(key, 3)

    F = 16  # in_feature (tabular features)
    w1, b1, w2, b2 = init_params(k_p, F)

    # --- small primary check: B=8 (single grid step, padded F 16 -> 128) ---
    B = 8
    x = jax.random.normal(k_x, (B, F), jnp.float32)
    out = jax.block_until_ready(critic_forward(x, w1, b1, w2, b2))
    ref = reference_forward(x, w1, b1, w2, b2)
    assert out.shape == (B, 1), out.shape
    err = float(jnp.max(jnp.abs(out - ref)))
    # bf16 MXU inputs => loosened tolerance vs the f32 reference.
    assert err < 3e-2, f"max abs err {err}"

    # --- multi-step grid + batch padding check: B=300 with tile_b=128 ---
    B2 = 300
    x2 = jax.random.normal(k_x2, (B2, F), jnp.float32)
    out2 = jax.block_until_ready(critic_forward(x2, w1, b1, w2, b2, tile_b_max=128))
    ref2 = reference_forward(x2, w1, b1, w2, b2)
    assert out2.shape == (B2, 1), out2.shape
    err2 = float(jnp.max(jnp.abs(out2 - ref2)))
    assert err2 < 3e-2, f"max abs err {err2}"

    print("KERNEL_OK")
</pallas_src>

<mosaic_0001>
module attributes {stable_mosaic.version = 11 : i64} {
  func.func @critic_kernel(%arg0: i32, %arg1: memref<8x128xbf16, #tpu.memory_space<vmem>>, %arg2: memref<128x128xbf16, #tpu.memory_space<vmem>>, %arg3: memref<1x128xf32, #tpu.memory_space<vmem>>, %arg4: memref<1x128xf32, #tpu.memory_space<vmem>>, %arg5: memref<1x1xf32, #tpu.memory_space<smem>>, %arg6: memref<8x1xf32, #tpu.memory_space<vmem>>) attributes {dimension_semantics = [#tpu.dimension_semantics<parallel>], iteration_bounds = array<i64: 1>, scalar_prefetch = 0 : i64, scratch_operands = 0 : i64, tpu.core_type = #tpu.core_type<tc>, window_params = [{transform_indices = @transform_0, window_bounds = array<i64: 8, 128>}, {pipeline_mode = #tpu.pipeline_mode<synchronous>, transform_indices = @transform_1, window_bounds = array<i64: 128, 128>}, {pipeline_mode = #tpu.pipeline_mode<synchronous>, transform_indices = @transform_2, window_bounds = array<i64: 1, 128>}, {pipeline_mode = #tpu.pipeline_mode<synchronous>, transform_indices = @transform_3, window_bounds = array<i64: 1, 128>}, {transform_indices = @transform_4, window_bounds = array<i64: 1, 1>}, {transform_indices = @transform_5, window_bounds = array<i64: 8, 1>}]} {
    %c0 = arith.constant 0 : index
    %c0_0 = arith.constant 0 : index
    %0 = vector.load %arg1[%c0, %c0_0] : memref<8x128xbf16, #tpu.memory_space<vmem>>, vector<8x128xbf16>
    %c0_1 = arith.constant 0 : index
    %c0_2 = arith.constant 0 : index
    %1 = vector.load %arg2[%c0_1, %c0_2] : memref<128x128xbf16, #tpu.memory_space<vmem>>, vector<128x128xbf16>
    %cst = arith.constant dense<0.000000e+00> : vector<8x128xf32>
    %2 = tpu.matmul %0, %1, %cst {dimension_numbers = #tpu.dot_dimension_numbers<[1], [0], [0], [1], [0, 0, 1, 1], [], []>} : vector<8x128xbf16>, vector<128x128xbf16>, vector<8x128xf32> -> vector<8x128xf32>
    %c0_3 = arith.constant 0 : index
    %c0_4 = arith.constant 0 : index
    %3 = vector.load %arg3[%c0_3, %c0_4] : memref<1x128xf32, #tpu.memory_space<vmem>>, vector<1x128xf32>
    %4 = vector.broadcast %3 : vector<1x128xf32> to vector<8x128xf32>
    %5 = arith.addf %2, %4 : vector<8x128xf32>
    %cst_5 = arith.constant 0.00999999977 : f32
    %6 = vector.broadcast %cst_5 : f32 to vector<8x128xf32>
    %7 = arith.mulf %6, %5 : vector<8x128xf32>
    %8 = arith.maximumf %5, %7 : vector<8x128xf32>
    %c0_6 = arith.constant 0 : index
    %c0_7 = arith.constant 0 : index
    %9 = vector.load %arg4[%c0_6, %c0_7] : memref<1x128xf32, #tpu.memory_space<vmem>>, vector<1x128xf32>
    %10 = vector.broadcast %9 : vector<1x128xf32> to vector<8x128xf32>
    %11 = arith.mulf %8, %10 : vector<8x128xf32>
    %cst_8 = arith.constant dense<0.000000e+00> : vector<8xf32>
    %12 = vector.multi_reduction <add>, %11, %cst_8 [1] : vector<8x128xf32> to vector<8xf32>
    %13 = vector.shape_cast %12 : vector<8xf32> to vector<8x1xf32>
    %c0_9 = arith.constant 0 : index
    %c0_10 = arith.constant 0 : index
    %14 = memref.load %arg5[%c0_9, %c0_10] : memref<1x1xf32, #tpu.memory_space<smem>>
    %15 = vector.broadcast %14 : f32 to vector<8x1xf32>
    %16 = arith.addf %13, %15 : vector<8x1xf32>
    %c0_11 = arith.constant 0 : index
    %c0_12 = arith.constant 0 : index
    %17 = vector.load %arg6[%c0_11, %c0_12] : memref<8x1xf32, #tpu.memory_space<vmem>>, vector<8x1xf32>
    tpu.vector_store %arg6[%c0_11, %c0_12], %16 {strides = array<i32>} : memref<8x1xf32, #tpu.memory_space<vmem>>, vector<8x1xf32>,
    return
  }
  func.func @transform_0(%arg0: i32) -> (i32, i32) {
    %c0_i32 = arith.constant 0 : i32
    %c0_i32_0 = arith.constant 0 : i32
    return %arg0, %c0_i32 : i32, i32
  }
  func.func @transform_1(%arg0: i32) -> (i32, i32) {
    %c0_i32 = arith.constant 0 : i32
    %c0_i32_0 = arith.constant 0 : i32
    %c0_i32_1 = arith.constant 0 : i32
    return %c0_i32, %c0_i32_0 : i32, i32
  }
  func.func @transform_2(%arg0: i32) -> (i32, i32) {
    %c0_i32 = arith.constant 0 : i32
    %c0_i32_0 = arith.constant 0 : i32
    %c0_i32_1 = arith.constant 0 : i32
    return %c0_i32, %c0_i32_0 : i32, i32
  }
  func.func @transform_3(%arg0: i32) -> (i32, i32) {
    %c0_i32 = arith.constant 0 : i32
    %c0_i32_0 = arith.constant 0 : i32
    %c0_i32_1 = arith.constant 0 : i32
    return %c0_i32, %c0_i32_0 : i32, i32
  }
  func.func @transform_4(%arg0: i32) -> (i32, i32) {
    %c0_i32 = arith.constant 0 : i32
    %c0_i32_0 = arith.constant 0 : i32
    %c0_i32_1 = arith.constant 0 : i32
    return %c0_i32, %c0_i32_0 : i32, i32
  }
  func.func @transform_5(%arg0: i32) -> (i32, i32) {
    %c0_i32 = arith.constant 0 : i32
    %c0_i32_0 = arith.constant 0 : i32
    return %arg0, %c0_i32 : i32, i32
  }
}

</mosaic_0001>

<llo_original>
// kernel: tpu_custom_call.1
$region0: #{tpu_custom_call.1}
  #allocation0 [shape = 'u32[]', space=smem, size = 0x4, offset = 0x4, fixed_abs, tag = 'smem constant byte address 0x4 - core index']
  #allocation1 [shape = 'u32[72,128]{1,0:T(1,128)}', space=vmem, size = 0x9000, scoped, tag = 'internal scratch']
  #allocation2 [shape = 'f32[1,1]{1,0:T(1,128)S(6)}', space=smem, size = 0x200, scoped, tag = 'scoped memory for tpu_custom_call.1']
  %s0 = inlined_call_operand.hbm [shape: bf16[8,128], index: 0, kind: input, shape index: {}]
  %s1 = inlined_call_operand.hbm [shape: bf16[128,128], index: 1, kind: input, shape index: {}]
  %s2 = inlined_call_operand.vmem [shape: f32[1,128], index: 2, kind: input, shape index: {}]
  %s3 = inlined_call_operand.vmem [shape: f32[1,128], index: 3, kind: input, shape index: {}]
  %s4 = inlined_call_operand.<no memory space> [shape: f32[1,1], index: 4, kind: input, shape index: {}]
  %s5 = inlined_call_operand.vmem [shape: f32[8,1], index: 5, kind: output, shape index: {}]
  %s6 = sld [smem:[#allocation0]]
  $region38: #{tpu_custom_call.1} parent=0
    _
  %s8 = ssub.s32 1, %s6
  %s9 = scalar_select 0, %s8, %s6
  %10 = sst [smem:[#allocation2]] %s4
  $region1: #{tpu_custom_call.1} parent=0
    #allocation3 [shape = 'u8[2048]{0}', space=vmem, size = 0x800, scoped, tag = 'input window, operand 0, single buffered']
    #allocation4 [shape = 's32[1]{0}', space=sflag, size = 0x4, scoped, tag = 'scoped memory for tpu_custom_call.1']
    #allocation5 [shape = 'u8[32768]{0}', space=vmem, size = 0x8000, scoped, tag = 'input window, operand 1, single buffered']
    #allocation6 [shape = 's32[1]{0}', space=sflag, size = 0x4, scoped, tag = 'scoped memory for tpu_custom_call.1']
    %11 = vsyncpa [#allocation4], 0
    %12 = vsyncpa [#allocation6], 0
    // Predicated region
    $region2: #{tpu_custom_call.1} parent=1 // pred_check
      _
    $region3: #{tpu_custom_call.1} parent=1 // pred_check_branch
      %14 = sbr.rel (0) target = $region5
    $region4: #{tpu_custom_call.1} parent=1 // pred_region
      %16 = vsyncadd [#allocation4], 0
      %s18 = sshll.u32 %s0, 4
      %s19 = int_to_ptr.hbm [resolvable:$true] %s18
      %s20 = sshll.u32 [#allocation3], 4
      %s21 = int_to_ptr.vmem [resolvable:$true] %s20
      %23 = dma.hbm_to_vmem [thread:$0]  %s19, 64, %s21, [#allocation4]
    $region5: #{tpu_custom_call.1} parent=1 // pred_fallthru
      _
    // Predicated region
    $region6: #{tpu_custom_call.1} parent=1 // pred_check
      _
    $region7: #{tpu_custom_call.1} parent=1 // pred_check_branch
      %25 = sbr.rel (0) target = $region9
    $region8: #{tpu_custom_call.1} parent=1 // pred_region
      %27 = vsyncadd [#allocation6], 0
      %s28 = sshll.u32 %s1, 4
      %s29 = int_to_ptr.hbm [resolvable:$true] %s28
      %s30 = sshll.u32 [#allocation5], 4
      %s31 = int_to_ptr.vmem [resolvable:$true] %s30
      %36 = dma.hbm_to_vmem [thread:$0]  %s29, 1024, %s31, [#allocation6], 64, 64, 4
    $region9: #{tpu_custom_call.1} parent=1 // pred_fallthru
      _
    // Predicated region
    $region10: #{tpu_custom_call.1} parent=1 // pred_check
      _
    $region11: #{tpu_custom_call.1} parent=1 // pred_check_branch
      %38 = sbr.rel (0) target = $region13
    $region12: #{tpu_custom_call.1} parent=1 // pred_region
      _
    $region13: #{tpu_custom_call.1} parent=1 // pred_fallthru
      _
    // Predicated region
    $region14: #{tpu_custom_call.1} parent=1 // pred_check
      _
    $region15: #{tpu_custom_call.1} parent=1 // pred_check_branch
      %40 = sbr.rel (0) target = $region17
    $region16: #{tpu_custom_call.1} parent=1 // pred_region
      _
    $region17: #{tpu_custom_call.1} parent=1 // pred_fallthru
      _
    // Predicated region
    $region18: #{tpu_custom_call.1} parent=1 // pred_check
      _
    $region19: #{tpu_custom_call.1} parent=1 // pred_check_branch
      %42 = sbr.rel (0) target = $region21
    $region20: #{tpu_custom_call.1} parent=1 // pred_region
      _
    $region21: #{tpu_custom_call.1} parent=1 // pred_fallthru
      _
    // Predicated region
    $region22: #{tpu_custom_call.1} parent=1 // pred_check
      _
    $region23: #{tpu_custom_call.1} parent=1 // pred_check_branch
      %44 = sbr.rel (0) target = $region25
    $region24: #{tpu_custom_call.1} parent=1 // pred_region
      %46 = dma.done [#allocation4], 64
    $region25: #{tpu_custom_call.1} parent=1 // pred_fallthru
      _
    // Predicated region
    $region26: #{tpu_custom_call.1} parent=1 // pred_check
      _
    $region27: #{tpu_custom_call.1} parent=1 // pred_check_branch
      %48 = sbr.rel (0) target = $region29
    $region28: #{tpu_custom_call.1} parent=1 // pred_region
      %50 = dma.done [#allocation6], 1024
    $region29: #{tpu_custom_call.1} parent=1 // pred_fallthru
      _
    %v51 = vld [vmem:[#allocation3] sm:$0xf]
    %v52 = vld [vmem:[#allocation5] sm:$0xf]
    %v53 = vld [vmem:[#allocation5 + $0x4] sm:$0xf]
    %v54 = vld [vmem:[#allocation5 + $0x8] sm:$0xf]
    %v55 = vld [vmem:[#allocation5 + $0xc] sm:$0xf]
    %v56 = vld [vmem:[#allocation5 + $0x10] sm:$0xf]
    %v57 = vld [vmem:[#allocation5 + $0x14] sm:$0xf]
    %v58 = vld [vmem:[#allocation5 + $0x18] sm:$0xf]
    %v59 = vld [vmem:[#allocation5 + $0x1c] sm:$0xf]
    %v60 = vld [vmem:[#allocation5 + $0x20] sm:$0xf]
    %v61 = vld [vmem:[#allocation5 + $0x24] sm:$0xf]
    %v62 = vld [vmem:[#allocation5 + $0x28] sm:$0xf]
    %v63 = vld [vmem:[#allocation5 + $0x2c] sm:$0xf]
    %v64 = vld [vmem:[#allocation5 + $0x30] sm:$0xf]
    %v65 = vld [vmem:[#allocation5 + $0x34] sm:$0xf]
    %v66 = vld [vmem:[#allocation5 + $0x38] sm:$0xf]
    %v67 = vld [vmem:[#allocation5 + $0x3c] sm:$0xf]
    %v68 = vld [vmem:[%s2] sm:$0x1]
    %v70 = vperm.slane %v68, 0
    %v88 = vunpack.c.l.b16 %v52
    %v89 = vunpack.c.l.b16 %v53
    %v90 = vunpack.c.l.b16 %v54
    %v91 = vunpack.c.l.b16 %v55
    %v92 = vunpack.c.l.b16 %v56
    %v93 = vunpack.c.l.b16 %v57
    %v94 = vunpack.c.l.b16 %v58
    %v95 = vunpack.c.l.b16 %v59
    %v96 = vunpack.c.l.b16 %v60
    %v97 = vunpack.c.l.b16 %v61
    %v98 = vunpack.c.l.b16 %v62
    %v99 = vunpack.c.l.b16 %v63
    %v100 = vunpack.c.l.b16 %v64
    %v101 = vunpack.c.l.b16 %v65
    %v102 = vunpack.c.l.b16 %v66
    %v103 = vunpack.c.l.b16 %v67
    %v104 = vpack.c.b16 %v89, %v88
    %v105 = vpack.c.b16 %v91, %v90
    %v106 = vpack.c.b16 %v93, %v92
    %v107 = vpack.c.b16 %v95, %v94
    %v108 = vpack.c.b16 %v97, %v96
    %v109 = vpack.c.b16 %v99, %v98
    %v110 = vpack.c.b16 %v101, %v100
    %v111 = vpack.c.b16 %v103, %v102
    %120 = vmatpush.bf16.msra.mxu0 %v111
    %121 = vmatpush.bf16.msra.mxu0 %v110
    %122 = vmatpush.bf16.msra.mxu0 %v109
    %123 = vmatpush.bf16.msra.mxu0 %v108
    %124 = vmatpush.bf16.msra.mxu0 %v107
    %125 = vmatpush.bf16.msra.mxu0 %v106
    %126 = vmatpush.bf16.msra.mxu0 %v105
    %127 = vmatpush.bf16.msra.mxu0 %v104
    %128 = vmatmul.bf16.gmra.mxu0 %v51
    %v129 = vpop.f32.mrf.mxu0
    %v130 = vadd.f32 %v70, %v129
    %v131 = vpop.f32.mrf.mxu0
    %132 = vdwg.mxu0
    %v133 = vmul.f32 %v130, 0.01
    %v134 = vmax.f32 %v130, %v133
    %v135 = vld [vmem:[%s3] sm:$0x1]
    %v137 = vperm.slane %v135, 0
    %v139 = vmul.f32 %v134, %v137
    %140 = vadd.xlane.f32.xlu0 %v139
    %v141 = vpop.xlane.xlu0 %140
    %s142 = sld [smem:[#allocation2]]
    %v143 = vstv %s142
    %v144 = vadd.f32 %v141, %v143
    %vm145 = vcmask 7168
    %146 = vst.msk [vmem:[%s5] sm:$0xff] %vm145, %v144
    // Predicated region
    $region30: #{tpu_custom_call.1} parent=1 // pred_check
      _
    $region31: #{tpu_custom_call.1} parent=1 // pred_check_branch
      %148 = sbr.rel (0) target = $region33
    $region32: #{tpu_custom_call.1} parent=1 // pred_region
      _
    $region33: #{tpu_custom_call.1} parent=1 // pred_fallthru
      _
    // Predicated region
    $region34: #{tpu_custom_call.1} parent=1 // pred_check
      _
    $region35: #{tpu_custom_call.1} parent=1 // pred_check_branch
      %150 = sbr.rel (0) target = $region37
    $region36: #{tpu_custom_call.1} parent=1 // pred_region
      _
    $region37: #{tpu_custom_call.1} parent=1 // pred_fallthru
      _
    %151 = vsyncpa [#allocation4], 1
    %152 = vsyncpa [#allocation6], 1

</llo_original>
